<compile_context>
chip_gen: v7x
topology: tpu7x:2x2x1
jax: 0.10.0
libtpu: 0.0.40
codegen_flags: <defaults>
</compile_context>

<pallas_src>
import functools

import jax
import jax.numpy as jnp
from jax import lax
from jax.experimental import pallas as pl
from jax.experimental.pallas import tpu as pltpu


def _round_up(x, m):
    return ((x + m - 1) // m) * m


def _sublane(dtype):
    # Native packed sublane count: 8 for 4-byte, 16 for 2-byte, 32 for 1-byte dtypes.
    return max(8, 32 // jnp.dtype(dtype).itemsize)


def _keep_mask(shape, seed_u32, row0_u32, p):
    """Deterministic per-element keep mask from a counter-based integer hash.

    Pure VPU integer ops, so it lowers both on real TPUs and in interpret mode
    (pltpu.prng_* has no CPU lowering).  Keyed on the global row index, so the
    mask does not change when bm / the grid layout changes.
    """
    r = lax.broadcasted_iota(jnp.uint32, shape, 0) + row0_u32
    c = lax.broadcasted_iota(jnp.uint32, shape, 1)
    h = seed_u32 + r * jnp.uint32(0x9E3779B1) + c * jnp.uint32(0x85EBCA77)
    h = h ^ (h >> 16)
    h = h * jnp.uint32(0x7FEB352D)
    h = h ^ (h >> 15)
    h = h * jnp.uint32(0x846CA68B)
    h = h ^ (h >> 16)
    threshold = jnp.uint32(min(int(p * 4294967296.0), 0xFFFFFFFF))
    return h >= threshold                        # P(keep) = 1 - p


def _ci_head_eval_kernel(x_ref, wt_ref, b_ref, o_ref):
    """Eval mode: dropout is identity -> plain linear."""
    y = jnp.dot(x_ref[...], wt_ref[...], preferred_element_type=jnp.float32)
    y = y + b_ref[...].astype(jnp.float32)
    o_ref[...] = y.astype(o_ref.dtype)


def _ci_head_train_kernel(seed_ref, x_ref, wt_ref, b_ref, o_ref, *, p):
    """Train mode: inverted dropout (hash keep-mask) + linear on one batch tile."""
    # TODO(synk): matches nn.Dropout semantics but not PyTorch's exact RNG stream.
    x = x_ref[...]                                       # [bm, F], native dtype
    bm = x.shape[0]
    row0 = (pl.program_id(0) * bm).astype(jnp.uint32)
    keep = _keep_mask(x.shape, seed_ref[0].astype(jnp.uint32), row0, p)
    x = jnp.where(keep, x, jnp.zeros_like(x))
    # MXU matmul in native dtype with f32 accumulation; N = num_outputs (unpadded).
    y = jnp.dot(x, wt_ref[...], preferred_element_type=jnp.float32)   # [bm, O]
    y = y * jnp.float32(1.0 / (1.0 - p))                 # rescale on tiny [bm, O]
    y = y + b_ref[...].astype(jnp.float32)
    o_ref[...] = y.astype(o_ref.dtype)


def _pick_bm(B, F, dtype, training):
    """Dtype- and mode-aware batch tile."""
    sub = _sublane(dtype)
    itemsize = jnp.dtype(dtype).itemsize
    # ~8 MiB x tile at eval (double-buffered by the pipeline); ~4 MiB in training
    # so the uint32 hash + masked-x temporaries stay inside v7x's 64 MiB VMEM.
    target = (4 << 20) if training else (8 << 20)
    rows_cap = max(sub, (target // max(1, F * itemsize)) // sub * sub)
    rows_cap = min(rows_cap, 8192)
    if B <= rows_cap:
        return _round_up(B, sub)                         # single tile
    # >= 4 grid steps so both v7x TensorCores get >= 2 steps each (keeps the
    # per-core DMA/compute pipeline overlapped); harmless on v5e/v6e.
    bm = min(rows_cap, _round_up(pl.cdiv(B, 4), sub))
    return max(sub, bm)


def ci_number_head(x, weight, bias, *, p=0.4, training=False, seed=0, bm=None):
    """Forward of CINumberHead. x: [B, F]; weight: [O, F]; bias: [O] -> [B, O]."""
    assert 0.0 <= p < 1.0, "dropout p must be in [0, 1)"
    B, F = x.shape
    O = weight.shape[0]
    assert weight.shape == (O, F) and bias.shape == (O,)

    apply_dropout = bool(training) and p > 0.0
    itemsize = jnp.dtype(x.dtype).itemsize
    if bm is None:
        bm = _pick_bm(B, F, x.dtype, apply_dropout)
    grid = pl.cdiv(B, bm)

    # Unpadded parameters: tiny (F, O) weight and (1, O) bias blocks, constant
    # across the grid so the pipeline does not re-fetch them.
    wt = weight.T.astype(x.dtype)                        # [F, O]
    b2 = bias.astype(jnp.float32).reshape(1, O)          # [1, O]

    cost = pl.CostEstimate(
        flops=2 * B * F * O,
        transcendentals=0,
        bytes_accessed=(B * F + F * O + B * O) * itemsize + O * 4,
    )

    # VMEM: double-buffered x/out tiles + (tiny) constant weight/bias blocks;
    # training adds the uint32 hash temp and the masked-x copy.
    vmem = (2 * bm * F * itemsize + 2 * F * O * itemsize
            + 2 * O * 4 + 2 * bm * O * itemsize)
    if apply_dropout:
        vmem += bm * F * (4 + itemsize)
    vmem_limit = int(min(max(vmem + (4 << 20), 16 << 20), 48 << 20))

    compiler_params = pltpu.CompilerParams(
        dimension_semantics=("parallel",),
        vmem_limit_bytes=vmem_limit,
    )

    if apply_dropout:
        kernel = functools.partial(_ci_head_train_kernel, p=float(p))
        grid_spec = pltpu.PrefetchScalarGridSpec(
            num_scalar_prefetch=1,                       # dropout seed in SMEM
            grid=(grid,),
            in_specs=[
                pl.BlockSpec((bm, F), lambda i, s: (i, 0)),   # x tile
                pl.BlockSpec((F, O), lambda i, s: (0, 0)),    # W^T (constant)
                pl.BlockSpec((1, O), lambda i, s: (0, 0)),    # bias (constant)
            ],
            out_specs=pl.BlockSpec((bm, O), lambda i, s: (i, 0)),
        )
        args = (jnp.array([seed], dtype=jnp.int32), x, wt, b2)
    else:
        kernel = _ci_head_eval_kernel
        grid_spec = pltpu.PrefetchScalarGridSpec(
            num_scalar_prefetch=0,
            grid=(grid,),
            in_specs=[
                pl.BlockSpec((bm, F), lambda i: (i, 0)),
                pl.BlockSpec((F, O), lambda i: (0, 0)),
                pl.BlockSpec((1, O), lambda i: (0, 0)),
            ],
            out_specs=pl.BlockSpec((bm, O), lambda i: (i, 0)),
        )
        args = (x, wt, b2)

    return pl.pallas_call(
        kernel,
        out_shape=jax.ShapeDtypeStruct((B, O), x.dtype),
        grid_spec=grid_spec,
        compiler_params=compiler_params,
        cost_estimate=cost,
    )(*args)


if __name__ == "__main__":
    # Small shapes implied by the module: flat features -> 1 regression output.
    B, IN_FEATURES, NUM_OUTPUTS = 8, 32, 1

    key = jax.random.PRNGKey(0)
    kx, kw, kb = jax.random.split(key, 3)

    x = jax.random.normal(kx, (B, IN_FEATURES), dtype=jnp.float32)
    # PyTorch Linear default init: U(-1/sqrt(fan_in), 1/sqrt(fan_in)).
    bound = 1.0 / (IN_FEATURES ** 0.5)
    weight = jax.random.uniform(kw, (NUM_OUTPUTS, IN_FEATURES),
                                dtype=jnp.float32, minval=-bound, maxval=bound)
    bias = jax.random.uniform(kb, (NUM_OUTPUTS,),
                              dtype=jnp.float32, minval=-bound, maxval=bound)

    # Eval-mode forward (dropout = identity), matching model.eval() in PyTorch.
    out = jax.block_until_ready(ci_number_head(x, weight, bias, p=0.4, training=False))
    ref = x @ weight.T + bias
    assert out.shape == (B, NUM_OUTPUTS)
    # Loose tolerance: the MXU f32 matmul may use multi-pass bf16 internally.
    assert bool(jnp.allclose(out, ref, atol=1e-2, rtol=1e-2))

    # Training-mode smoke test (semantics check; exact PyTorch RNG stream is
    # not reproduced — see TODO in the kernel).
    out_tr = jax.block_until_ready(
        ci_number_head(x, weight, bias, p=0.4, training=True, seed=123))
    assert out_tr.shape == (B, NUM_OUTPUTS)
    assert bool(jnp.all(jnp.isfinite(out_tr)))

    print("KERNEL_OK")
</pallas_src>

<mosaic_0001>
module attributes {stable_mosaic.version = 11 : i64} {
  func.func @_ci_head_eval_kernel(%arg0: i32, %arg1: memref<8x32xf32, #tpu.memory_space<vmem>>, %arg2: memref<32x1xf32, #tpu.memory_space<vmem>>, %arg3: memref<1x1xf32, #tpu.memory_space<vmem>>, %arg4: memref<8x1xf32, #tpu.memory_space<vmem>>) attributes {dimension_semantics = [#tpu.dimension_semantics<parallel>], iteration_bounds = array<i64: 1>, scalar_prefetch = 0 : i64, scratch_operands = 0 : i64, tpu.core_type = #tpu.core_type<tc>, window_params = [{transform_indices = @transform_0, window_bounds = array<i64: 8, 32>}, {pipeline_mode = #tpu.pipeline_mode<synchronous>, transform_indices = @transform_1, window_bounds = array<i64: 32, 1>}, {pipeline_mode = #tpu.pipeline_mode<synchronous>, transform_indices = @transform_2, window_bounds = array<i64: 1, 1>}, {transform_indices = @transform_3, window_bounds = array<i64: 8, 1>}]} {
    %c0 = arith.constant 0 : index
    %c0_0 = arith.constant 0 : index
    %0 = vector.load %arg1[%c0, %c0_0] : memref<8x32xf32, #tpu.memory_space<vmem>>, vector<8x32xf32>
    %c0_1 = arith.constant 0 : index
    %c0_2 = arith.constant 0 : index
    %1 = vector.load %arg2[%c0_1, %c0_2] : memref<32x1xf32, #tpu.memory_space<vmem>>, vector<32x1xf32>
    %cst = arith.constant dense<0.000000e+00> : vector<8x1xf32>
    %2 = tpu.matmul %0, %1, %cst {dimension_numbers = #tpu.dot_dimension_numbers<[1], [0], [0], [1], [0, 0, 1, 1], [], []>} : vector<8x32xf32>, vector<32x1xf32>, vector<8x1xf32> -> vector<8x1xf32>
    %c0_3 = arith.constant 0 : index
    %c0_4 = arith.constant 0 : index
    %3 = vector.load %arg3[%c0_3, %c0_4] : memref<1x1xf32, #tpu.memory_space<vmem>>, vector<1x1xf32>
    %4 = vector.broadcast %3 : vector<1x1xf32> to vector<8x1xf32>
    %5 = arith.addf %2, %4 : vector<8x1xf32>
    %c0_5 = arith.constant 0 : index
    %c0_6 = arith.constant 0 : index
    %6 = vector.load %arg4[%c0_5, %c0_6] : memref<8x1xf32, #tpu.memory_space<vmem>>, vector<8x1xf32>
    tpu.vector_store %arg4[%c0_5, %c0_6], %5 {strides = array<i32>} : memref<8x1xf32, #tpu.memory_space<vmem>>, vector<8x1xf32>,
    return
  }
  func.func @transform_0(%arg0: i32) -> (i32, i32) {
    %c0_i32 = arith.constant 0 : i32
    %c0_i32_0 = arith.constant 0 : i32
    return %arg0, %c0_i32 : i32, i32
  }
  func.func @transform_1(%arg0: i32) -> (i32, i32) {
    %c0_i32 = arith.constant 0 : i32
    %c0_i32_0 = arith.constant 0 : i32
    %c0_i32_1 = arith.constant 0 : i32
    return %c0_i32, %c0_i32_0 : i32, i32
  }
  func.func @transform_2(%arg0: i32) -> (i32, i32) {
    %c0_i32 = arith.constant 0 : i32
    %c0_i32_0 = arith.constant 0 : i32
    %c0_i32_1 = arith.constant 0 : i32
    return %c0_i32, %c0_i32_0 : i32, i32
  }
  func.func @transform_3(%arg0: i32) -> (i32, i32) {
    %c0_i32 = arith.constant 0 : i32
    %c0_i32_0 = arith.constant 0 : i32
    return %arg0, %c0_i32 : i32, i32
  }
}

</mosaic_0001>

<llo_original>
// kernel: tpu_custom_call.1
$region0: #{tpu_custom_call.1}
  #allocation0 [shape = 'u32[]', space=smem, size = 0x4, offset = 0x4, fixed_abs, tag = 'smem constant byte address 0x4 - core index']
  #allocation1 [shape = 'u32[144,128]{1,0:T(1,128)}', space=vmem, size = 0x12000, scoped, tag = 'internal scratch']
  #allocation2 [shape = 'f32[1,1]{1,0:T(1,128)S(1)}', space=vmem, size = 0x200, scoped, tag = 'scoped memory for tpu_custom_call.1']
  %s0 = inlined_call_operand.vmem [shape: f32[8,32], index: 0, kind: input, shape index: {}]
  %s1 = inlined_call_operand.vmem [shape: f32[32,1], index: 1, kind: input, shape index: {}]
  %s2 = inlined_call_operand.<no memory space> [shape: f32[1,1], index: 2, kind: input, shape index: {}]
  %s3 = inlined_call_operand.vmem [shape: f32[8,1], index: 3, kind: output, shape index: {}]
  %s4 = sld [smem:[#allocation0]]
  $region22: #{tpu_custom_call.1} parent=0
    _
  %s6 = ssub.s32 1, %s4
  %s7 = scalar_select 0, %s6, %s4
  %v8 = vstv %s2
  %9 = vst [vmem:[#allocation2] sm:$0x1] %v8
  // Predicated region
  $region2: #{tpu_custom_call.1} parent=0 // pred_check
    _
  $region3: #{tpu_custom_call.1} parent=0 // pred_check_branch
    %11 = sbr.rel (0) target = $region5
  $region4: #{tpu_custom_call.1} parent=0 // pred_region
    _
  $region5: #{tpu_custom_call.1} parent=0 // pred_fallthru
    _
  // Predicated region
  $region6: #{tpu_custom_call.1} parent=0 // pred_check
    _
  $region7: #{tpu_custom_call.1} parent=0 // pred_check_branch
    %13 = sbr.rel (0) target = $region9
  $region8: #{tpu_custom_call.1} parent=0 // pred_region
    _
  $region9: #{tpu_custom_call.1} parent=0 // pred_fallthru
    _
  // Predicated region
  $region10: #{tpu_custom_call.1} parent=0 // pred_check
    _
  $region11: #{tpu_custom_call.1} parent=0 // pred_check_branch
    %15 = sbr.rel (0) target = $region13
  $region12: #{tpu_custom_call.1} parent=0 // pred_region
    _
  $region13: #{tpu_custom_call.1} parent=0 // pred_fallthru
    _
  %v16 = vld [vmem:[%s0] sm:$0xff]
  %v17 = vld [vmem:[%s1] sm:$0xff]
  %v18 = vld [vmem:[%s1 + $0x8] sm:$0xff]
  %v19 = vld [vmem:[%s1 + $0x10] sm:$0xff]
  %v20 = vld [vmem:[%s1 + $0x18] sm:$0xff]
  %v21 = vld [vmem:[#allocation2] sm:$0x1]
  %v23 = vlaneseq
  %v24 = vshrl.u32 %v23, 7
  %v25 = vsub.s32 0, %v24
  %v26 = vrot.slane %v21, %v25
  %vm28 = vcmask 261120
  %v30 = vsel %vm28, %v16, 0
  %32 = vmatprep.subr.mxu0 0.0
  %33 = vmatpush1.msra.mxu0 %v17
  %34 = vmatprep.subr.mxu0 0.0
  %35 = vmatpush1.msra.mxu0 %v18
  %36 = vmatprep.subr.mxu0 0.0
  %37 = vmatpush1.msra.mxu0 %v19
  %38 = vmatprep.subr.mxu0 0.0
  %39 = vmatpush1.msra.mxu0 %v20
  %40 = vmatprep.subr.mxu0 0.0
  %41 = vmatpush1.msra.mxu0 0.0
  %42 = vmatprep.subr.mxu0 0.0
  %43 = vmatpush1.msra.mxu0 0.0
  %44 = vmatprep.subr.mxu0 0.0
  %45 = vmatpush1.msra.mxu0 0.0
  %46 = vmatprep.subr.mxu0 0.0
  %47 = vmatpush1.msra.mxu0 0.0
  %48 = vmatprep.subr.mxu0 0.0
  %49 = vmatpush1.msra.mxu0 0.0
  %50 = vmatprep.subr.mxu0 0.0
  %51 = vmatpush1.msra.mxu0 0.0
  %52 = vmatprep.subr.mxu0 0.0
  %53 = vmatpush1.msra.mxu0 0.0
  %54 = vmatprep.subr.mxu0 0.0
  %55 = vmatpush1.msra.mxu0 0.0
  %56 = vmatprep.subr.mxu0 0.0
  %57 = vmatpush1.msra.mxu0 0.0
  %58 = vmatprep.subr.mxu0 0.0
  %59 = vmatpush1.msra.mxu0 0.0
  %60 = vmatprep.subr.mxu0 0.0
  %61 = vmatpush1.msra.mxu0 0.0
  %62 = vmatprep.subr.mxu0 0.0
  %63 = vmatpush1.msra.mxu0 0.0
  %64 = vmatprep.subr.mxu0 0.0
  %65 = vmatpush1.msra.mxu0 0.0
  %66 = vmatprep.subr.mxu0 0.0
  %67 = vmatpush1.msra.mxu0 0.0
  %68 = vmatprep.subr.mxu0 0.0
  %69 = vmatpush1.msra.mxu0 0.0
  %70 = vmatprep.subr.mxu0 0.0
  %71 = vmatpush1.msra.mxu0 0.0
  %72 = vmatprep.subr.mxu0 0.0
  %73 = vmatpush1.msra.mxu0 0.0
  %74 = vmatprep.subr.mxu0 0.0
  %75 = vmatpush1.msra.mxu0 0.0
  %76 = vmatprep.subr.mxu0 0.0
  %77 = vmatpush1.msra.mxu0 0.0
  %78 = vmatprep.subr.mxu0 0.0
  %79 = vmatpush1.msra.mxu0 0.0
  %80 = vmatprep.subr.mxu0 0.0
  %81 = vmatpush1.msra.mxu0 0.0
  %82 = vmatprep.subr.mxu0 0.0
  %83 = vmatpush1.msra.mxu0 0.0
  %84 = vmatprep.subr.mxu0 0.0
  %85 = vmatpush1.msra.mxu0 0.0
  %86 = vmatprep.subr.mxu0 0.0
  %87 = vmatpush1.msra.mxu0 0.0
  %88 = vmatprep.subr.mxu0 0.0
  %89 = vmatpush1.msra.mxu0 0.0
  %90 = vmatprep.subr.mxu0 0.0
  %91 = vmatpush1.msra.mxu0 0.0
  %92 = vmatprep.subr.mxu0 0.0
  %93 = vmatpush1.msra.mxu0 0.0
  %94 = vmatprep.subr.mxu0 0.0
  %95 = vmatpush1.msra.mxu0 0.0
  %96 = vmatprep.mubr.f32.mxu0 0.0
  %97 = vmatmul.mubr.f32.gmra.mrb[0].mxu0 %v30
  %v98 = vpop.f32.mrb[0].mxu0
  %v99 = vadd.f32 %v26, %v98
  %v100 = vpop.f32.mrb[0].mxu0
  %101 = vdwg.mxu0
  %vm102 = vcmask 7168
  %103 = vst.msk [vmem:[%s3] sm:$0xff] %vm102, %v99
  // Predicated region
  $region14: #{tpu_custom_call.1} parent=0 // pred_check
    _
  $region15: #{tpu_custom_call.1} parent=0 // pred_check_branch
    %105 = sbr.rel (0) target = $region17
  $region16: #{tpu_custom_call.1} parent=0 // pred_region
    _
  $region17: #{tpu_custom_call.1} parent=0 // pred_fallthru
    _
  // Predicated region
  $region18: #{tpu_custom_call.1} parent=0 // pred_check
    _
  $region19: #{tpu_custom_call.1} parent=0 // pred_check_branch
    %107 = sbr.rel (0) target = $region21
  $region20: #{tpu_custom_call.1} parent=0 // pred_region
    _
  $region21: #{tpu_custom_call.1} parent=0 // pred_fallthru
    _

</llo_original>
